<compile_context>
chip_gen: v5e
topology: v5e:2x2
jax: 0.10.0
libtpu: 0.0.40
codegen_flags: <defaults>
</compile_context>

<pallas_src>
import functools

import jax
import jax.numpy as jnp
from jax.experimental import pallas as pl
from jax.experimental.pallas import tpu as pltpu

NUM_GEN = 5                       # env.num_gen (act() uses randint(0, 2, 5))
NUM_NODES = 128                   # self.num_nodes
N_OUT = 2 * NUM_GEN               # self.n_out = 10
OBS_SIZE = NUM_GEN + 1 + 8 + 8    # 22

OUT_PAD = 128                     # q output padded 10 -> 128: lane-dense stores


def _round_up(x, m):
    return ((x + m - 1) // m) * m


def _cdiv(a, b):
    return -(-a // b)


def _batch_tiling(B, block_b):
    """Evenly-sized batch tiles, rounded to 16 rows (bf16 sublane packing)."""
    tiles = max(1, _cdiv(B, max(block_b, 16)))
    TB = _round_up(_cdiv(B, tiles), 16)
    tiles = _cdiv(B, TB)          # grid; last tile may run past B (writes dropped)
    return TB, tiles


# --------------------------------------------------------------------------- #
# Kernels
# --------------------------------------------------------------------------- #
def qagent_fwd_kernel(x_ref, w1_ref, b1_ref, w2_ref, b2_ref, o_ref):
    """q = tanh(x @ W1 + b1) @ W2 + b2, f32 accumulation, lane-dense output."""
    x = x_ref[...].astype(w1_ref.dtype)                              # cast in VMEM
    h = jnp.dot(x, w1_ref[...],
                preferred_element_type=jnp.float32) + b1_ref[...]    # [TB, 128] f32
    h = jnp.tanh(h)                                                  # f32 EUP (v5e-safe)
    h = h.astype(w2_ref.dtype)                                       # bf16 MXU operand
    q = jnp.dot(h, w2_ref[...],
                preferred_element_type=jnp.float32) + b2_ref[...]    # [TB, OUT_PAD] f32
    o_ref[...] = q.astype(o_ref.dtype)


def qagent_act_kernel(x_ref, w1_ref, b1_ref, w2d_ref, b2d_ref, a_ref):
    """Fused greedy act(): action[g] = argmax(q[2g], q[2g+1]) = (q_on - q_off > 0).

    W2d/b2d hold the (on - off) column differences of the quantized W2/b2, so the
    decision is bit-consistent (up to accumulation rounding) with the forward q.
    """
    x = x_ref[...].astype(w1_ref.dtype)
    h = jnp.dot(x, w1_ref[...],
                preferred_element_type=jnp.float32) + b1_ref[...]
    h = jnp.tanh(h).astype(w1_ref.dtype).astype(jnp.float32)         # same h quantization as fwd
    delta = jnp.dot(h, w2d_ref[...],
                    preferred_element_type=jnp.float32) + b2d_ref[...]   # [TB, NUM_GEN]
    a_ref[...] = (delta > 0.0).astype(jnp.int32)                     # tie -> 0 (argmax-compatible)


# --------------------------------------------------------------------------- #
# Wrappers
# --------------------------------------------------------------------------- #
def qagent_forward(x, params, *, block_b=2048, out_dtype=jnp.bfloat16):
    """x: [B, OBS_SIZE] observations. Returns [B, N_OUT] q-values (out_dtype)."""
    w1p, b1p, w2p, b2p = params[:4]
    B = x.shape[0]
    TB, tiles = _batch_tiling(B, block_b)

    q_pad = pl.pallas_call(
        qagent_fwd_kernel,
        out_shape=jax.ShapeDtypeStruct((B, OUT_PAD), out_dtype),
        grid_spec=pltpu.PrefetchScalarGridSpec(
            num_scalar_prefetch=0,
            grid=(tiles,),
            in_specs=[
                pl.BlockSpec((TB, OBS_SIZE), lambda i: (i, 0)),          # x tile (K unpadded)
                pl.BlockSpec((OBS_SIZE, NUM_NODES), lambda i: (0, 0)),   # W1 resident
                pl.BlockSpec((1, NUM_NODES), lambda i: (0, 0)),          # b1 resident (f32)
                pl.BlockSpec((NUM_NODES, OUT_PAD), lambda i: (0, 0)),    # W2 resident
                pl.BlockSpec((1, OUT_PAD), lambda i: (0, 0)),            # b2 resident (f32)
            ],
            out_specs=pl.BlockSpec((TB, OUT_PAD), lambda i: (i, 0)),
        ),
        # On v7x, pltpu.CORE_PARALLEL (with an even 2-way tile split) shares the
        # batch across both TensorCores; "parallel" is the portable default.
        compiler_params=pltpu.CompilerParams(
            dimension_semantics=("parallel",),
        ),
    )(x, w1p, b1p, w2p, b2p)
    return q_pad[:, :N_OUT]


@functools.partial(jax.jit, static_argnames=("block_b",))
def qagent_act(x, params, block_b=2048):
    """Greedy action (act() path): ONE pallas_call emitting int32 actions."""
    w1p, b1p, _w2p, _b2p, w2d, b2d = params
    B = x.shape[0]
    TB, tiles = _batch_tiling(B, block_b)

    return pl.pallas_call(
        qagent_act_kernel,
        out_shape=jax.ShapeDtypeStruct((B, NUM_GEN), jnp.int32),
        grid_spec=pltpu.PrefetchScalarGridSpec(
            num_scalar_prefetch=0,
            grid=(tiles,),
            in_specs=[
                pl.BlockSpec((TB, OBS_SIZE), lambda i: (i, 0)),
                pl.BlockSpec((OBS_SIZE, NUM_NODES), lambda i: (0, 0)),
                pl.BlockSpec((1, NUM_NODES), lambda i: (0, 0)),
                pl.BlockSpec((NUM_NODES, NUM_GEN), lambda i: (0, 0)),    # W2_on - W2_off (f32)
                pl.BlockSpec((1, NUM_GEN), lambda i: (0, 0)),            # b2_on - b2_off (f32)
            ],
            out_specs=pl.BlockSpec((TB, NUM_GEN), lambda i: (i, 0)),
        ),
        compiler_params=pltpu.CompilerParams(
            dimension_semantics=("parallel",),
        ),
    )(x, w1p, b1p, w2d, b2d)


# --------------------------------------------------------------------------- #
# Parameter prep
# --------------------------------------------------------------------------- #
def init_params(key):
    """PyTorch-Linear-style init (uniform +-1/sqrt(fan_in)); logical shapes,
    weights stored as [in, out] (torch W^T)."""
    k1, k2, k3, k4 = jax.random.split(key, 4)
    lim1 = 1.0 / jnp.sqrt(jnp.float32(OBS_SIZE))
    lim2 = 1.0 / jnp.sqrt(jnp.float32(NUM_NODES))
    w1 = jax.random.uniform(k1, (OBS_SIZE, NUM_NODES), jnp.float32, -lim1, lim1)
    b1 = jax.random.uniform(k2, (NUM_NODES,), jnp.float32, -lim1, lim1)
    w2 = jax.random.uniform(k3, (NUM_NODES, N_OUT), jnp.float32, -lim2, lim2)
    b2 = jax.random.uniform(k4, (N_OUT,), jnp.float32, -lim2, lim2)
    return w1, b1, w2, b2


def pad_params(params, operand_dtype=jnp.bfloat16):
    """One-time TPU-friendly param prep.

    Matmul operands (W1, W2) in `operand_dtype` (bf16 default -> half HBM traffic,
    native-rate MXU); biases in f32.  W2/b2 are zero-padded 10 -> 128 columns for
    lane-dense q output.  Also builds the fused-act decision weights
    W2d = W2[:,on] - W2[:,off] (f32, derived from the *quantized* W2 so the fused
    argmax matches the forward kernel).  Keep optimizer state on the logical
    (unpadded) params so the zero pad columns stay exactly zero.
    """
    w1, b1, w2, b2 = params
    w1p = w1.astype(operand_dtype)                                   # [22, 128] (no K pad)
    b1p = b1.reshape(1, NUM_NODES).astype(jnp.float32)

    w2q = w2.astype(operand_dtype)
    w2p = jnp.zeros((NUM_NODES, OUT_PAD), operand_dtype).at[:, :N_OUT].set(w2q)
    b2p = jnp.zeros((1, OUT_PAD), jnp.float32).at[0, :N_OUT].set(b2.astype(jnp.float32))

    w2f = w2q.astype(jnp.float32)
    w2d = (w2f[:, 1::2] - w2f[:, 0::2]).astype(jnp.float32)          # [128, NUM_GEN]
    b2d = (b2[1::2] - b2[0::2]).reshape(1, NUM_GEN).astype(jnp.float32)
    return w1p, b1p, w2p, b2p, w2d, b2d


def reference_forward(x, w1, b1, w2, b2):
    h = jnp.tanh(x @ w1 + b1)
    return h @ w2 + b2


# TODO(synk): the Adam/MSELoss training step (update()), epsilon-greedy python
# randomness and the dict->array observation preprocessing stay host/JAX-side;
# no custom_vjp is defined, so do not jax.grad through qagent_forward directly.

if __name__ == "__main__":
    key = jax.random.PRNGKey(0)
    kp, kx1, kx2 = jax.random.split(key, 3)
    params = init_params(kp)                       # logical torch-style params
    params_f32 = pad_params(params, jnp.float32)   # exactness path
    params_bf16 = pad_params(params)               # default bf16 operand path

    fwd = jax.jit(qagent_forward, static_argnames=("block_b", "out_dtype"))

    # ---- act()-style tiny batch (B=2) ----
    B = 2
    x = jax.random.normal(kx1, (B, OBS_SIZE), jnp.float32)
    q_ref = reference_forward(x, *params)

    q_f32 = jax.block_until_ready(fwd(x, params_f32, out_dtype=jnp.float32))
    assert q_f32.shape == (B, N_OUT)
    assert jnp.allclose(q_f32, q_ref, atol=1e-5, rtol=1e-5), "f32 mismatch vs reference"

    a_f32 = jax.block_until_ready(qagent_act(x, params_f32))
    a_ref = jnp.argmax(q_ref.reshape(B, NUM_GEN, 2), axis=-1)
    assert a_f32.shape == (B, NUM_GEN)
    assert jnp.array_equal(a_f32, a_ref), "fused greedy action mismatch (f32)"

    # default bf16 operands + bf16 q output
    q_bf = jax.block_until_ready(fwd(x, params_bf16))
    assert q_bf.dtype == jnp.bfloat16
    assert jnp.allclose(q_bf.astype(jnp.float32), q_ref, atol=5e-2, rtol=5e-2), \
        "bf16 forward outside tolerance"

    a_bf = jax.block_until_ready(qagent_act(x, params_bf16))
    q_bf_f32 = fwd(x, params_bf16, out_dtype=jnp.float32)
    a_bf_ref = jnp.argmax(q_bf_f32.reshape(B, NUM_GEN, 2), axis=-1)
    assert jnp.array_equal(a_bf, a_bf_ref), "fused bf16 action != argmax of bf16 forward"

    # ---- update()-style batch: grid > 1, non-divisible tail handled in-kernel ----
    B2 = 300
    x2 = jax.random.normal(kx2, (B2, OBS_SIZE), jnp.float32)
    q2_ref = reference_forward(x2, *params)

    q2 = jax.block_until_ready(fwd(x2, params_bf16, block_b=128))   # grid=3, TB=112
    assert q2.shape == (B2, N_OUT)
    assert jnp.allclose(q2.astype(jnp.float32), q2_ref, atol=5e-2, rtol=5e-2), \
        "batched bf16 forward outside tolerance"

    # single-tile (grid = 1) configuration recommended for single-TC v5e/v6e
    q2_one = jax.block_until_ready(fwd(x2, params_bf16))            # block_b=2048 -> grid=1
    assert jnp.allclose(q2_one.astype(jnp.float32), q2.astype(jnp.float32)), \
        "grid=1 vs grid=3 mismatch"

    print("KERNEL_OK")
</pallas_src>

<mosaic_0001>
module attributes {stable_mosaic.version = 11 : i64} {
  func.func @qagent_fwd_kernel(%arg0: i32, %arg1: memref<16x22xf32, #tpu.memory_space<vmem>>, %arg2: memref<22x128xf32, #tpu.memory_space<vmem>>, %arg3: memref<1x128xf32, #tpu.memory_space<vmem>>, %arg4: memref<128x128xf32, #tpu.memory_space<vmem>>, %arg5: memref<1x128xf32, #tpu.memory_space<vmem>>, %arg6: memref<16x128xf32, #tpu.memory_space<vmem>>) attributes {dimension_semantics = [#tpu.dimension_semantics<parallel>], iteration_bounds = array<i64: 1>, scalar_prefetch = 0 : i64, scratch_operands = 0 : i64, tpu.core_type = #tpu.core_type<tc>, window_params = [{transform_indices = @transform_0, window_bounds = array<i64: 16, 22>}, {pipeline_mode = #tpu.pipeline_mode<synchronous>, transform_indices = @transform_1, window_bounds = array<i64: 22, 128>}, {pipeline_mode = #tpu.pipeline_mode<synchronous>, transform_indices = @transform_2, window_bounds = array<i64: 1, 128>}, {pipeline_mode = #tpu.pipeline_mode<synchronous>, transform_indices = @transform_3, window_bounds = array<i64: 128, 128>}, {pipeline_mode = #tpu.pipeline_mode<synchronous>, transform_indices = @transform_4, window_bounds = array<i64: 1, 128>}, {transform_indices = @transform_5, window_bounds = array<i64: 16, 128>}]} {
    %c0 = arith.constant 0 : index
    %c0_0 = arith.constant 0 : index
    %0 = vector.load %arg1[%c0, %c0_0] : memref<16x22xf32, #tpu.memory_space<vmem>>, vector<16x22xf32>
    %c0_1 = arith.constant 0 : index
    %c0_2 = arith.constant 0 : index
    %1 = vector.load %arg2[%c0_1, %c0_2] : memref<22x128xf32, #tpu.memory_space<vmem>>, vector<22x128xf32>
    %cst = arith.constant dense<0.000000e+00> : vector<16x128xf32>
    %2 = tpu.matmul %0, %1, %cst {dimension_numbers = #tpu.dot_dimension_numbers<[1], [0], [0], [1], [0, 0, 1, 1], [], []>} : vector<16x22xf32>, vector<22x128xf32>, vector<16x128xf32> -> vector<16x128xf32>
    %c0_3 = arith.constant 0 : index
    %c0_4 = arith.constant 0 : index
    %3 = vector.load %arg3[%c0_3, %c0_4] : memref<1x128xf32, #tpu.memory_space<vmem>>, vector<1x128xf32>
    %4 = vector.broadcast %3 : vector<1x128xf32> to vector<16x128xf32>
    %5 = arith.addf %2, %4 : vector<16x128xf32>
    %6 = math.tanh %5 : vector<16x128xf32>
    %c0_5 = arith.constant 0 : index
    %c0_6 = arith.constant 0 : index
    %7 = vector.load %arg4[%c0_5, %c0_6] : memref<128x128xf32, #tpu.memory_space<vmem>>, vector<128x128xf32>
    %cst_7 = arith.constant dense<0.000000e+00> : vector<16x128xf32>
    %8 = tpu.matmul %6, %7, %cst_7 {dimension_numbers = #tpu.dot_dimension_numbers<[1], [0], [0], [1], [0, 0, 1, 1], [], []>} : vector<16x128xf32>, vector<128x128xf32>, vector<16x128xf32> -> vector<16x128xf32>
    %c0_8 = arith.constant 0 : index
    %c0_9 = arith.constant 0 : index
    %9 = vector.load %arg5[%c0_8, %c0_9] : memref<1x128xf32, #tpu.memory_space<vmem>>, vector<1x128xf32>
    %10 = vector.broadcast %9 : vector<1x128xf32> to vector<16x128xf32>
    %11 = arith.addf %8, %10 : vector<16x128xf32>
    %c0_10 = arith.constant 0 : index
    %c0_11 = arith.constant 0 : index
    %12 = vector.load %arg6[%c0_10, %c0_11] : memref<16x128xf32, #tpu.memory_space<vmem>>, vector<16x128xf32>
    tpu.vector_store %arg6[%c0_10, %c0_11], %11 {strides = array<i32>} : memref<16x128xf32, #tpu.memory_space<vmem>>, vector<16x128xf32>,
    return
  }
  func.func @transform_0(%arg0: i32) -> (i32, i32) {
    %c0_i32 = arith.constant 0 : i32
    %c0_i32_0 = arith.constant 0 : i32
    return %arg0, %c0_i32 : i32, i32
  }
  func.func @transform_1(%arg0: i32) -> (i32, i32) {
    %c0_i32 = arith.constant 0 : i32
    %c0_i32_0 = arith.constant 0 : i32
    %c0_i32_1 = arith.constant 0 : i32
    return %c0_i32, %c0_i32_0 : i32, i32
  }
  func.func @transform_2(%arg0: i32) -> (i32, i32) {
    %c0_i32 = arith.constant 0 : i32
    %c0_i32_0 = arith.constant 0 : i32
    %c0_i32_1 = arith.constant 0 : i32
    return %c0_i32, %c0_i32_0 : i32, i32
  }
  func.func @transform_3(%arg0: i32) -> (i32, i32) {
    %c0_i32 = arith.constant 0 : i32
    %c0_i32_0 = arith.constant 0 : i32
    %c0_i32_1 = arith.constant 0 : i32
    return %c0_i32, %c0_i32_0 : i32, i32
  }
  func.func @transform_4(%arg0: i32) -> (i32, i32) {
    %c0_i32 = arith.constant 0 : i32
    %c0_i32_0 = arith.constant 0 : i32
    %c0_i32_1 = arith.constant 0 : i32
    return %c0_i32, %c0_i32_0 : i32, i32
  }
  func.func @transform_5(%arg0: i32) -> (i32, i32) {
    %c0_i32 = arith.constant 0 : i32
    %c0_i32_0 = arith.constant 0 : i32
    return %arg0, %c0_i32 : i32, i32
  }
}

</mosaic_0001>

<llo_original>
// kernel: qagent_forward.1
$region0: #{qagent_forward.1}
  #allocation0 [shape = 'u32[]', space=smem, size = 0x4, offset = 0x4, fixed_abs, tag = 'smem constant byte address 0x4 - core index']
  #allocation1 [shape = 'u32[72,128]{1,0:T(1,128)}', space=vmem, size = 0x9000, scoped, tag = 'internal scratch']
  %s0 = inlined_call_operand.hbm [shape: f32[2,22], index: 0, kind: input, shape index: {}]
  %s1 = inlined_call_operand.hbm [shape: f32[22,128], index: 1, kind: input, shape index: {}]
  %s2 = inlined_call_operand.vmem [shape: f32[1,128], index: 2, kind: input, shape index: {}]
  %s3 = inlined_call_operand.hbm [shape: f32[128,128], index: 3, kind: input, shape index: {}]
  %s4 = inlined_call_operand.vmem [shape: f32[1,128], index: 4, kind: input, shape index: {}]
  %s5 = inlined_call_operand.hbm [shape: f32[2,128], index: 5, kind: output, shape index: {}]
  %s6 = sld [smem:[#allocation0]]
  $region42: #{qagent_forward.1} parent=0
    _
  %s8 = ssub.s32 1, %s6
  %s9 = scalar_select 0, %s8, %s6
  $region1: #{qagent_forward.1} parent=0
    #allocation2 [shape = 'u8[8192]{0}', space=vmem, size = 0x2000, scoped, tag = 'input window, operand 0, single buffered']
    #allocation3 [shape = 's32[1]{0}', space=sflag, size = 0x4, scoped, tag = 'scoped memory for qagent_forward.1']
    #allocation4 [shape = 's32[1]{0}', space=sflag, size = 0x4, scoped, tag = 'scoped memory for qagent_forward.1']
    #allocation5 [shape = 'u8[12288]{0}', space=vmem, size = 0x3000, scoped, tag = 'input window, operand 1, single buffered']
    #allocation6 [shape = 's32[1]{0}', space=sflag, size = 0x4, scoped, tag = 'scoped memory for qagent_forward.1']
    #allocation7 [shape = 'u8[65536]{0}', space=vmem, size = 0x10000, scoped, tag = 'input window, operand 3, single buffered']
    #allocation8 [shape = 'u8[8192]{0}', space=vmem, size = 0x2000, scoped, tag = 'output window, operand 0, single buffered']
    %10 = vsyncpa [#allocation3], 0
    %11 = vsyncpa [#allocation6], 0
    %12 = vsyncpa [#allocation4], 0
    // Predicated region
    $region2: #{qagent_forward.1} parent=1 // pred_check
      _
    $region3: #{qagent_forward.1} parent=1 // pred_check_branch
      %14 = sbr.rel (0) target = $region5
    $region4: #{qagent_forward.1} parent=1 // pred_region
      %16 = vsyncadd [#allocation3], 224
      %s17 = sshll.u32 %s0, 4
      %s18 = int_to_ptr.hbm [resolvable:$true] %s17
      %s19 = sshll.u32 [#allocation2], 4
      %s20 = int_to_ptr.vmem [resolvable:$true] %s19
      %25 = dma.hbm_to_vmem [thread:$0]  %s18, 32, %s20, [#allocation3], 32, 32, 2
    $region5: #{qagent_forward.1} parent=1 // pred_fallthru
      _
    // Predicated region
    $region6: #{qagent_forward.1} parent=1 // pred_check
      _
    $region7: #{qagent_forward.1} parent=1 // pred_check_branch
      %27 = sbr.rel (0) target = $region9
    $region8: #{qagent_forward.1} parent=1 // pred_region
      %29 = vsyncadd [#allocation6], 0
      %s30 = sshll.u32 %s1, 4
      %s31 = int_to_ptr.hbm [resolvable:$true] %s30
      %s32 = sshll.u32 [#allocation5], 4
      %s33 = int_to_ptr.vmem [resolvable:$true] %s32
      %38 = dma.hbm_to_vmem [thread:$0]  %s31, 384, %s33, [#allocation6], 128, 128, 8
    $region9: #{qagent_forward.1} parent=1 // pred_fallthru
      _
    // Predicated region
    $region10: #{qagent_forward.1} parent=1 // pred_check
      _
    $region11: #{qagent_forward.1} parent=1 // pred_check_branch
      %40 = sbr.rel (0) target = $region13
    $region12: #{qagent_forward.1} parent=1 // pred_region
      _
    $region13: #{qagent_forward.1} parent=1 // pred_fallthru
      _
    // Predicated region
    $region14: #{qagent_forward.1} parent=1 // pred_check
      _
    $region15: #{qagent_forward.1} parent=1 // pred_check_branch
      %42 = sbr.rel (0) target = $region17
    $region16: #{qagent_forward.1} parent=1 // pred_region
      %44 = vsyncadd [#allocation6], 0
      %s45 = sshll.u32 %s3, 4
      %s46 = int_to_ptr.hbm [resolvable:$true] %s45
      %s47 = sshll.u32 [#allocation7], 4
      %s48 = int_to_ptr.vmem [resolvable:$true] %s47
      %53 = dma.hbm_to_vmem [thread:$0]  %s46, 2048, %s48, [#allocation6], 128, 128, 8
    $region17: #{qagent_forward.1} parent=1 // pred_fallthru
      _
    // Predicated region
    $region18: #{qagent_forward.1} parent=1 // pred_check
      _
    $region19: #{qagent_forward.1} parent=1 // pred_check_branch
      %55 = sbr.rel (0) target = $region21
    $region20: #{qagent_forward.1} parent=1 // pred_region
      _
    $region21: #{qagent_forward.1} parent=1 // pred_fallthru
      _
    // Predicated region
    $region22: #{qagent_forward.1} parent=1 // pred_check
      _
    $region23: #{qagent_forward.1} parent=1 // pred_check_branch
      %57 = sbr.rel (0) target = $region25
    $region24: #{qagent_forward.1} parent=1 // pred_region
      %59 = dma.done [#allocation3], 256
    $region25: #{qagent_forward.1} parent=1 // pred_fallthru
      _
    // Predicated region
    $region26: #{qagent_forward.1} parent=1 // pred_check
      _
    $region27: #{qagent_forward.1} parent=1 // pred_check_branch
      %61 = sbr.rel (0) target = $region29
    $region28: #{qagent_forward.1} parent=1 // pred_region
      %63 = dma.done [#allocation6], 384
    $region29: #{qagent_forward.1} parent=1 // pred_fallthru
      _
    // Predicated region
    $region30: #{qagent_forward.1} parent=1 // pred_check
      _
    $region31: #{qagent_forward.1} parent=1 // pred_check_branch
      %65 = sbr.rel (0) target = $region33
    $region32: #{qagent_forward.1} parent=1 // pred_region
      %67 = dma.done [#allocation6], 2048
    $region33: #{qagent_forward.1} parent=1 // pred_fallthru
      _
    %v68 = vld [vmem:[#allocation2] sm:$0xff]
    %v69 = vld [vmem:[#allocation2 + $0x8] sm:$0xff]
    %v70 = vld [vmem:[#allocation5] sm:$0xff]
    %v71 = vld [vmem:[#allocation5 + $0x8] sm:$0xff]
    %v72 = vld [vmem:[#allocation5 + $0x10] sm:$0x3f]
    %v73 = vld [vmem:[%s2] sm:$0x1]
    %v75 = vperm.slane %v73, 0
    %vm77 = vcmask 179200
    %v79 = vsel %vm77, %v68, 0
    %v82 = vsel %vm77, %v69, 0
    %vm84 = vcmask 1045504
    %v86 = vsel %vm84, %v72, 0
    %88 = vmatpush.msra.mxu0 0.0
    %89 = vmatpush.msra.mxu0 0.0
    %90 = vmatpush.msra.mxu0 0.0
    %91 = vmatpush.msra.mxu0 0.0
    %92 = vmatpush.msra.mxu0 0.0
    %93 = vmatpush.msra.mxu0 0.0
    %94 = vmatpush.msra.mxu0 0.0
    %95 = vmatpush.msra.mxu0 0.0
    %96 = vmatpush.msra.mxu0 0.0
    %97 = vmatpush.msra.mxu0 0.0
    %98 = vmatpush.msra.mxu0 0.0
    %99 = vmatpush.msra.mxu0 0.0
    %100 = vmatpush.msra.mxu0 0.0
    %101 = vmatpush.msra.mxu0 %v86
    %102 = vmatpush.msra.mxu0 %v71
    %103 = vmatpush.msra.mxu0 %v70
    %104 = vmatmul.f32.gmra.mxu0 %v79
    %v105 = vpop.f32.mrf.mxu0
    %v106 = vadd.f32 %v75, %v105
    %107 = vmatmul.f32.gmra.mxu0 %v82
    %v108 = vpop.f32.mrf.mxu0
    %v109 = vadd.f32 %v75, %v108
    %110 = vdwg.mxu0
    %v111 = vtanh.pop %v106
    %v112 = vtanh.pop %v109
    %v113 = vld [vmem:[#allocation7] sm:$0xff]
    %v114 = vld [vmem:[#allocation7 + $0x8] sm:$0xff]
    %v115 = vld [vmem:[#allocation7 + $0x10] sm:$0xff]
    %v116 = vld [vmem:[#allocation7 + $0x18] sm:$0xff]
    %v117 = vld [vmem:[#allocation7 + $0x20] sm:$0xff]
    %v118 = vld [vmem:[#allocation7 + $0x28] sm:$0xff]
    %v119 = vld [vmem:[#allocation7 + $0x30] sm:$0xff]
    %v120 = vld [vmem:[#allocation7 + $0x38] sm:$0xff]
    %v121 = vld [vmem:[#allocation7 + $0x40] sm:$0xff]
    %v122 = vld [vmem:[#allocation7 + $0x48] sm:$0xff]
    %v123 = vld [vmem:[#allocation7 + $0x50] sm:$0xff]
    %v124 = vld [vmem:[#allocation7 + $0x58] sm:$0xff]
    %v125 = vld [vmem:[#allocation7 + $0x60] sm:$0xff]
    %v126 = vld [vmem:[#allocation7 + $0x68] sm:$0xff]
    %v127 = vld [vmem:[#allocation7 + $0x70] sm:$0xff]
    %v128 = vld [vmem:[#allocation7 + $0x78] sm:$0xff]
    %v129 = vld [vmem:[%s4] sm:$0x1]
    %v131 = vperm.slane %v129, 0
    %133 = vmatpush.msra.mxu0 %v128
    %134 = vmatpush.msra.mxu0 %v127
    %135 = vmatpush.msra.mxu0 %v126
    %136 = vmatpush.msra.mxu0 %v125
    %137 = vmatpush.msra.mxu0 %v124
    %138 = vmatpush.msra.mxu0 %v123
    %139 = vmatpush.msra.mxu0 %v122
    %140 = vmatpush.msra.mxu0 %v121
    %141 = vmatpush.msra.mxu0 %v120
    %142 = vmatpush.msra.mxu0 %v119
    %143 = vmatpush.msra.mxu0 %v118
    %144 = vmatpush.msra.mxu0 %v117
    %145 = vmatpush.msra.mxu0 %v116
    %146 = vmatpush.msra.mxu0 %v115
    %147 = vmatpush.msra.mxu0 %v114
    %148 = vmatpush.msra.mxu0 %v113
    %149 = vmatmul.f32.gmra.mxu0 %v111
    %v150 = vpop.f32.mrf.mxu0
    %v151 = vadd.f32 %v131, %v150
    %152 = vmatmul.f32.gmra.mxu0 %v112
    %v153 = vpop.f32.mrf.mxu0
    %v154 = vadd.f32 %v131, %v153
    %155 = vdwg.mxu0
    %156 = vst [vmem:[#allocation8] sm:$0xff] %v151
    %157 = vst [vmem:[#allocation8 + $0x8] sm:$0xff] %v154
    // Predicated region
    $region34: #{qagent_forward.1} parent=1 // pred_check
      _
    $region35: #{qagent_forward.1} parent=1 // pred_check_branch
      %159 = sbr.rel (0) target = $region37
    $region36: #{qagent_forward.1} parent=1 // pred_region
      %161 = vsyncadd [#allocation4], 224
      %s162 = sshll.u32 [#allocation8], 4
      %s163 = int_to_ptr.vmem [resolvable:$true] %s162
      %s164 = sshll.u32 %s5, 4
      %s165 = int_to_ptr.hbm [resolvable:$true] %s164
      %170 = dma.vmem_to_hbm [thread:$0]  %s163, 32, %s165, [#allocation4], 32, 32, 2
    $region37: #{qagent_forward.1} parent=1 // pred_fallthru
      _
    // Predicated region
    $region38: #{qagent_forward.1} parent=1 // pred_check
      _
    $region39: #{qagent_forward.1} parent=1 // pred_check_branch
      %172 = sbr.rel (0) target = $region41
    $region40: #{qagent_forward.1} parent=1 // pred_region
      %174 = dma.done [#allocation4], 256
    $region41: #{qagent_forward.1} parent=1 // pred_fallthru
      _
    %175 = vsyncpa [#allocation3], 1
    %176 = vsyncpa [#allocation6], 1
    %177 = vsyncpa [#allocation4], 1

</llo_original>
